<compile_context>
chip_gen: v6e
topology: v6e:2x2x1
jax: 0.10.0
libtpu: 0.0.40
codegen_flags: <defaults>
</compile_context>

<pallas_src>
import functools

import jax
import jax.numpy as jnp
from jax import lax
from jax.experimental import pallas as pl
from jax.experimental.pallas import tpu as pltpu

_EPS = 1e-12


def _l2normalize(x):
    # matches F.normalize(x, dim=-1): x / max(||x||, eps); rsqrt -> EUP slot.
    ss = jnp.sum(x * x, axis=-1, keepdims=True)
    return x * lax.rsqrt(jnp.maximum(ss, _EPS * _EPS))


def _round_up(x, m):
    return ((x + m - 1) // m) * m


def _pad2(x, rows, cols):
    r, c = x.shape
    return jnp.pad(x, ((0, rows - r), (0, cols - c)))


# ----------------------------------------------------------------------------
# Path 1: pos_mask == eye(N)  (extra_pos_mask is None) -> diagonal-only kernel
# ----------------------------------------------------------------------------
def _diag_kernel(a1_ref, s1_ref, a2_ref, s2_ref, o_ref):
    tm, dp = a1_ref.shape
    a1 = _l2normalize(a1_ref[...])
    s1 = _l2normalize(s1_ref[...])
    a2 = _l2normalize(a2_ref[...])
    s2 = _l2normalize(s2_ref[...])
    p = a1 * s1 + a2 * s2                       # (tm, dp), f32, pure VPU

    # Sublane-group partial sum: static-slice VPU adds only (no per-step XLU
    # reduction); the tiny (gi, 8, dp) output is reduced to a scalar in XLA.
    part = p[0:8, :]
    for r in range(1, tm // 8):
        part = part + p[r * 8:(r + 1) * 8, :]
    o_ref[...] = part[None, :, :]               # lane-dense (1, 8, dp) store


def _bootstrap_diag(a1, s1, a2, s2, *, block_rows=256):
    n, d = a1.shape
    dp = max(_round_up(d, 128), 128)
    tm = min(_round_up(block_rows, 8), _round_up(n, 8))
    n_pad = _round_up(n, tm)
    gi = n_pad // tm

    a1p = _pad2(a1, n_pad, dp)
    s1p = _pad2(s1, n_pad, dp)
    a2p = _pad2(a2, n_pad, dp)
    s2p = _pad2(s2, n_pad, dp)

    row_spec = pl.BlockSpec((tm, dp), lambda i: (i, 0))
    vmem_bytes = int(4 * (2 * tm * dp * 4) + 2 * (8 * dp * 4) + (2 << 20))

    parts = pl.pallas_call(
        _diag_kernel,
        out_shape=jax.ShapeDtypeStruct((gi, 8, dp), jnp.float32),
        grid=(gi,),
        in_specs=[row_spec, row_spec, row_spec, row_spec],
        out_specs=pl.BlockSpec((1, 8, dp), lambda i: (i, 0, 0)),
        compiler_params=pltpu.CompilerParams(
            dimension_semantics=("parallel",),      # megacore-friendly (v7x)
            vmem_limit_bytes=vmem_bytes),
    )(a1p, s1p, a2p, s2p)

    # zero-padded rows contribute exactly 0; mean over the n real rows.
    return jnp.sum(parts) * (0.5 / n)


# ----------------------------------------------------------------------------
# Path 2: extra_pos_mask given -> masked similarity matmul, eye built in-kernel
# ----------------------------------------------------------------------------
def _masked_kernel(a1_ref, s1n_ref, a2_ref, s2n_ref, m_ref, o_ref, acc_ref,
                   *, scale):
    tm, tn = acc_ref.shape
    i = pl.program_id(0)
    j = pl.program_id(1)

    @pl.when((i == 0) & (j == 0))
    def _init():
        acc_ref[...] = jnp.zeros_like(acc_ref)

    # Per-tile anchor normalization (f32 math), bf16 MXU operands.
    a1 = _l2normalize(a1_ref[...]).astype(s1n_ref.dtype)
    a2 = _l2normalize(a2_ref[...]).astype(s2n_ref.dtype)

    # Contract last dims of both operands: A @ S^T without explicit transpose.
    dn = (((1,), (1,)), ((), ()))
    sim1 = lax.dot_general(a1, s1n_ref[...], dn,
                           preferred_element_type=jnp.float32)
    sim2 = lax.dot_general(a2, s2n_ref[...], dn,
                           preferred_element_type=jnp.float32)

    # pos_mask = eye OR extra; eye is synthesized in-kernel (no N x N stream).
    rows = i * tm + lax.broadcasted_iota(jnp.int32, (tm, tn), 0)
    cols = j * tn + lax.broadcasted_iota(jnp.int32, (tm, tn), 1)
    keep = jnp.logical_or(rows == cols, m_ref[...] != 0)

    acc_ref[...] += jnp.where(keep, sim1 + sim2, 0.0)

    @pl.when((i == pl.num_programs(0) - 1) & (j == pl.num_programs(1) - 1))
    def _finalize():
        o_ref[...] = jnp.sum(acc_ref[...], keepdims=True) * scale


def _bootstrap_masked(a1, s1, a2, s2, extra_pos_mask, *,
                      block_rows=256, block_cols=512):
    n, d = a1.shape
    dp = max(_round_up(d, 256), 256)        # full MXU contraction width (v6e/v7x)
    tm = min(_round_up(block_rows, 8), _round_up(n, 8))
    tn = min(_round_up(block_cols, 128), _round_up(n, 128))
    n_pad_r = _round_up(n, tm)
    n_pad_c = _round_up(n, tn)
    gi, gj = n_pad_r // tm, n_pad_c // tn

    # Samples L2-normalized ONCE in the wrapper -> bf16 MXU banks (no f32 banks
    # or step-0 normalization prologue inside the kernel).
    s1n = _pad2(_l2normalize(s1).astype(jnp.bfloat16), n_pad_c, dp)
    s2n = _pad2(_l2normalize(s2).astype(jnp.bfloat16), n_pad_c, dp)
    a1p = _pad2(a1, n_pad_r, dp)
    a2p = _pad2(a2, n_pad_r, dp)
    mp = _pad2(extra_pos_mask.astype(jnp.int8), n_pad_r, n_pad_c)

    anchor_spec = pl.BlockSpec((tm, dp), lambda i, j: (i, 0))
    bank_spec = pl.BlockSpec((tn, dp), lambda i, j: (j, 0))
    mask_spec = pl.BlockSpec((tm, tn), lambda i, j: (i, j))

    vmem_bytes = int(2 * (2 * tm * dp * 4) + 2 * (2 * tn * dp * 2)
                     + 2 * tm * tn + 7 * tm * tn * 4 + (4 << 20))

    out = pl.pallas_call(
        functools.partial(_masked_kernel, scale=0.5 / n),
        out_shape=jax.ShapeDtypeStruct((1, 1), jnp.float32),
        grid=(gi, gj),
        in_specs=[anchor_spec, bank_spec, anchor_spec, bank_spec, mask_spec],
        out_specs=pl.BlockSpec((1, 1), lambda i, j: (0, 0)),
        scratch_shapes=[pltpu.VMEM((tm, tn), jnp.float32)],
        compiler_params=pltpu.CompilerParams(
            dimension_semantics=("arbitrary", "arbitrary"),
            vmem_limit_bytes=vmem_bytes),
    )(a1p, s1n, a2p, s2n, mp)
    return out[0, 0]


# ----------------------------------------------------------------------------
# Public wrapper: BootstrapContrast(mode='L2L') forward
# ----------------------------------------------------------------------------
def bootstrap_contrast_l2l(h1_pred, h2_pred, h1_target, h2_target,
                           extra_pos_mask=None):
    f32 = jnp.float32
    a1, s1 = h1_target.astype(f32), h2_pred.astype(f32)   # branch 1
    a2, s2 = h2_target.astype(f32), h1_pred.astype(f32)   # branch 2
    if extra_pos_mask is None:
        # pos_mask == eye(N): loss is just the trace -> mask-free diagonal path.
        return _bootstrap_diag(a1, s1, a2, s2)
    return _bootstrap_masked(a1, s1, a2, s2, extra_pos_mask)


# ----------------------------------------------------------------------------
# Pure-JAX reference (BootstrapContrast L2L + BootstrapLatent)
# ----------------------------------------------------------------------------
def _reference(h1_pred, h2_pred, h1_target, h2_target, extra_pos_mask=None):
    def nrm(x):
        norm = jnp.linalg.norm(x, axis=-1, keepdims=True)
        return x / jnp.maximum(norm, 1e-12)
    n = h1_pred.shape[0]
    pm = jnp.eye(n, dtype=jnp.float32)
    if extra_pos_mask is not None:
        pm = jnp.logical_or(pm.astype(bool),
                            extra_pos_mask.astype(bool)).astype(jnp.float32)
    l1 = ((nrm(h1_target) @ nrm(h2_pred).T) * pm).sum(-1).mean()
    l2 = ((nrm(h2_target) @ nrm(h1_pred).T) * pm).sum(-1).mean()
    return (l1 + l2) * 0.5


if __name__ == "__main__":
    key = jax.random.PRNGKey(0)
    k1, k2, k3, k4, k5 = jax.random.split(key, 5)

    N, D = 32, 32  # small shapes: 32 nodes, 32-dim embeddings
    h1_pred = jax.random.normal(k1, (N, D), dtype=jnp.float32)
    h2_pred = jax.random.normal(k2, (N, D), dtype=jnp.float32)
    h1_target = jax.random.normal(k3, (N, D), dtype=jnp.float32)
    h2_target = jax.random.normal(k4, (N, D), dtype=jnp.float32)

    # Standard BGRL case (pos_mask = eye): mask-free diagonal kernel, all f32.
    loss = bootstrap_contrast_l2l(h1_pred, h2_pred, h1_target, h2_target)
    jax.block_until_ready(loss)
    ref = _reference(h1_pred, h2_pred, h1_target, h2_target)
    assert jnp.isfinite(loss)
    assert jnp.abs(loss - ref) < 1e-4, (loss, ref)

    # extra_pos_mask case: masked-matmul kernel (eye synthesized in-kernel,
    # int8 extra mask, bf16 pre-normalized sample banks -> loose tolerance).
    extra = jax.random.uniform(k5, (N, N)) < 0.1
    loss_m = bootstrap_contrast_l2l(h1_pred, h2_pred, h1_target, h2_target,
                                    extra_pos_mask=extra)
    jax.block_until_ready(loss_m)
    ref_m = _reference(h1_pred, h2_pred, h1_target, h2_target, extra)
    assert jnp.isfinite(loss_m)
    assert jnp.abs(loss_m - ref_m) < 2e-2, (loss_m, ref_m)

    print("KERNEL_OK")
</pallas_src>

<mosaic_0001>
module attributes {stable_mosaic.version = 11 : i64} {
  func.func @_diag_kernel(%arg0: i32, %arg1: memref<32x128xf32, #tpu.memory_space<vmem>>, %arg2: memref<32x128xf32, #tpu.memory_space<vmem>>, %arg3: memref<32x128xf32, #tpu.memory_space<vmem>>, %arg4: memref<32x128xf32, #tpu.memory_space<vmem>>, %arg5: memref<1x8x128xf32, #tpu.memory_space<vmem>>) attributes {dimension_semantics = [#tpu.dimension_semantics<parallel>], iteration_bounds = array<i64: 1>, scalar_prefetch = 0 : i64, scratch_operands = 0 : i64, tpu.core_type = #tpu.core_type<tc>, window_params = [{transform_indices = @transform_0, window_bounds = array<i64: 32, 128>}, {transform_indices = @transform_1, window_bounds = array<i64: 32, 128>}, {transform_indices = @transform_2, window_bounds = array<i64: 32, 128>}, {transform_indices = @transform_3, window_bounds = array<i64: 32, 128>}, {transform_indices = @transform_4, window_bounds = array<i64: 1, 8, 128>}]} {
    %c0 = arith.constant 0 : index
    %c0_0 = arith.constant 0 : index
    %0 = vector.load %arg1[%c0, %c0_0] : memref<32x128xf32, #tpu.memory_space<vmem>>, vector<32x128xf32>
    %1 = arith.mulf %0, %0 : vector<32x128xf32>
    %cst = arith.constant dense<0.000000e+00> : vector<32xf32>
    %2 = vector.multi_reduction <add>, %1, %cst [1] : vector<32x128xf32> to vector<32xf32>
    %3 = vector.shape_cast %2 : vector<32xf32> to vector<32x1xf32>
    %cst_1 = arith.constant 1.000000e-24 : f32
    %4 = vector.broadcast %cst_1 : f32 to vector<32x1xf32>
    %5 = arith.maximumf %3, %4 : vector<32x1xf32>
    %6 = math.rsqrt %5 : vector<32x1xf32>
    %7 = vector.broadcast %6 : vector<32x1xf32> to vector<32x128xf32>
    %8 = arith.mulf %0, %7 : vector<32x128xf32>
    %c0_2 = arith.constant 0 : index
    %c0_3 = arith.constant 0 : index
    %9 = vector.load %arg2[%c0_2, %c0_3] : memref<32x128xf32, #tpu.memory_space<vmem>>, vector<32x128xf32>
    %10 = arith.mulf %9, %9 : vector<32x128xf32>
    %cst_4 = arith.constant dense<0.000000e+00> : vector<32xf32>
    %11 = vector.multi_reduction <add>, %10, %cst_4 [1] : vector<32x128xf32> to vector<32xf32>
    %12 = vector.shape_cast %11 : vector<32xf32> to vector<32x1xf32>
    %cst_5 = arith.constant 1.000000e-24 : f32
    %13 = vector.broadcast %cst_5 : f32 to vector<32x1xf32>
    %14 = arith.maximumf %12, %13 : vector<32x1xf32>
    %15 = math.rsqrt %14 : vector<32x1xf32>
    %16 = vector.broadcast %15 : vector<32x1xf32> to vector<32x128xf32>
    %17 = arith.mulf %9, %16 : vector<32x128xf32>
    %c0_6 = arith.constant 0 : index
    %c0_7 = arith.constant 0 : index
    %18 = vector.load %arg3[%c0_6, %c0_7] : memref<32x128xf32, #tpu.memory_space<vmem>>, vector<32x128xf32>
    %19 = arith.mulf %18, %18 : vector<32x128xf32>
    %cst_8 = arith.constant dense<0.000000e+00> : vector<32xf32>
    %20 = vector.multi_reduction <add>, %19, %cst_8 [1] : vector<32x128xf32> to vector<32xf32>
    %21 = vector.shape_cast %20 : vector<32xf32> to vector<32x1xf32>
    %cst_9 = arith.constant 1.000000e-24 : f32
    %22 = vector.broadcast %cst_9 : f32 to vector<32x1xf32>
    %23 = arith.maximumf %21, %22 : vector<32x1xf32>
    %24 = math.rsqrt %23 : vector<32x1xf32>
    %25 = vector.broadcast %24 : vector<32x1xf32> to vector<32x128xf32>
    %26 = arith.mulf %18, %25 : vector<32x128xf32>
    %c0_10 = arith.constant 0 : index
    %c0_11 = arith.constant 0 : index
    %27 = vector.load %arg4[%c0_10, %c0_11] : memref<32x128xf32, #tpu.memory_space<vmem>>, vector<32x128xf32>
    %28 = arith.mulf %27, %27 : vector<32x128xf32>
    %cst_12 = arith.constant dense<0.000000e+00> : vector<32xf32>
    %29 = vector.multi_reduction <add>, %28, %cst_12 [1] : vector<32x128xf32> to vector<32xf32>
    %30 = vector.shape_cast %29 : vector<32xf32> to vector<32x1xf32>
    %cst_13 = arith.constant 1.000000e-24 : f32
    %31 = vector.broadcast %cst_13 : f32 to vector<32x1xf32>
    %32 = arith.maximumf %30, %31 : vector<32x1xf32>
    %33 = math.rsqrt %32 : vector<32x1xf32>
    %34 = vector.broadcast %33 : vector<32x1xf32> to vector<32x128xf32>
    %35 = arith.mulf %27, %34 : vector<32x128xf32>
    %36 = arith.mulf %8, %17 : vector<32x128xf32>
    %37 = arith.mulf %26, %35 : vector<32x128xf32>
    %38 = arith.addf %36, %37 : vector<32x128xf32>
    %39 = vector.extract_strided_slice %38 {offsets = [0, 0], sizes = [8, 128], strides = [1, 1]} : vector<32x128xf32> to vector<8x128xf32>
    %40 = vector.extract_strided_slice %38 {offsets = [8, 0], sizes = [8, 128], strides = [1, 1]} : vector<32x128xf32> to vector<8x128xf32>
    %41 = arith.addf %39, %40 : vector<8x128xf32>
    %42 = vector.extract_strided_slice %38 {offsets = [16, 0], sizes = [8, 128], strides = [1, 1]} : vector<32x128xf32> to vector<8x128xf32>
    %43 = arith.addf %41, %42 : vector<8x128xf32>
    %44 = vector.extract_strided_slice %38 {offsets = [24, 0], sizes = [8, 128], strides = [1, 1]} : vector<32x128xf32> to vector<8x128xf32>
    %45 = arith.addf %43, %44 : vector<8x128xf32>
    %46 = vector.shape_cast %45 : vector<8x128xf32> to vector<1x8x128xf32>
    %c0_14 = arith.constant 0 : index
    %c0_15 = arith.constant 0 : index
    %c0_16 = arith.constant 0 : index
    %47 = vector.load %arg5[%c0_14, %c0_15, %c0_16] : memref<1x8x128xf32, #tpu.memory_space<vmem>>, vector<1x8x128xf32>
    tpu.vector_store %arg5[%c0_14, %c0_15, %c0_16], %46 {strides = array<i32>} : memref<1x8x128xf32, #tpu.memory_space<vmem>>, vector<1x8x128xf32>,
    return
  }
  func.func @transform_0(%arg0: i32) -> (i32, i32) {
    %c0_i32 = arith.constant 0 : i32
    %c0_i32_0 = arith.constant 0 : i32
    return %arg0, %c0_i32 : i32, i32
  }
  func.func @transform_1(%arg0: i32) -> (i32, i32) {
    %c0_i32 = arith.constant 0 : i32
    %c0_i32_0 = arith.constant 0 : i32
    return %arg0, %c0_i32 : i32, i32
  }
  func.func @transform_2(%arg0: i32) -> (i32, i32) {
    %c0_i32 = arith.constant 0 : i32
    %c0_i32_0 = arith.constant 0 : i32
    return %arg0, %c0_i32 : i32, i32
  }
  func.func @transform_3(%arg0: i32) -> (i32, i32) {
    %c0_i32 = arith.constant 0 : i32
    %c0_i32_0 = arith.constant 0 : i32
    return %arg0, %c0_i32 : i32, i32
  }
  func.func @transform_4(%arg0: i32) -> (i32, i32, i32) {
    %c0_i32 = arith.constant 0 : i32
    %c0_i32_0 = arith.constant 0 : i32
    %c0_i32_1 = arith.constant 0 : i32
    return %arg0, %c0_i32, %c0_i32_0 : i32, i32, i32
  }
}

</mosaic_0001>

<llo_original>
// kernel: tpu_custom_call.1
$region0: #{tpu_custom_call.1}
  #allocation0 [shape = 'u32[]', space=smem, size = 0x4, offset = 0x4, fixed_abs, tag = 'smem constant byte address 0x4 - core index']
  #allocation1 [shape = 'u32[144,128]{1,0:T(1,128)}', space=vmem, size = 0x12000, scoped, tag = 'internal scratch']
  %s0 = inlined_call_operand.hbm [shape: f32[32,128], index: 0, kind: input, shape index: {}]
  %s1 = inlined_call_operand.hbm [shape: f32[32,128], index: 1, kind: input, shape index: {}]
  %s2 = inlined_call_operand.hbm [shape: f32[32,128], index: 2, kind: input, shape index: {}]
  %s3 = inlined_call_operand.hbm [shape: f32[32,128], index: 3, kind: input, shape index: {}]
  %s4 = inlined_call_operand.hbm [shape: f32[1,8,128], index: 4, kind: output, shape index: {}]
  %s5 = sld [smem:[#allocation0]]
  $region42: #{tpu_custom_call.1} parent=0
    _
  %s7 = ssub.s32 1, %s5
  %s8 = scalar_select 0, %s7, %s5
  $region1: #{tpu_custom_call.1} parent=0
    #allocation2 [shape = 'u8[16384]{0}', space=vmem, size = 0x4000, scoped, tag = 'input window, operand 0, single buffered']
    #allocation3 [shape = 's32[1]{0}', space=sflag, size = 0x4, scoped, tag = 'scoped memory for tpu_custom_call.1']
    #allocation4 [shape = 's32[1]{0}', space=sflag, size = 0x4, scoped, tag = 'scoped memory for tpu_custom_call.1']
    #allocation5 [shape = 'u8[16384]{0}', space=vmem, size = 0x4000, scoped, tag = 'input window, operand 1, single buffered']
    #allocation6 [shape = 's32[1]{0}', space=sflag, size = 0x4, scoped, tag = 'scoped memory for tpu_custom_call.1']
    #allocation7 [shape = 'u8[16384]{0}', space=vmem, size = 0x4000, scoped, tag = 'input window, operand 2, single buffered']
    #allocation8 [shape = 'u8[16384]{0}', space=vmem, size = 0x4000, scoped, tag = 'input window, operand 3, single buffered']
    #allocation9 [shape = 's32[1]{0}', space=sflag, size = 0x4, scoped, tag = 'scoped memory for tpu_custom_call.1']
    #allocation10 [shape = 'u8[4096]{0}', space=vmem, size = 0x1000, scoped, tag = 'output window, operand 0, single buffered']
    %9 = vsyncpa [#allocation3], 0
    %10 = vsyncpa [#allocation6], 0
    %11 = vsyncpa [#allocation9], 0
    %12 = vsyncpa [#allocation4], 0
    // Predicated region
    $region2: #{tpu_custom_call.1} parent=1 // pred_check
      _
    $region3: #{tpu_custom_call.1} parent=1 // pred_check_branch
      %14 = sbr.rel (0) target = $region5
    $region4: #{tpu_custom_call.1} parent=1 // pred_region
      %s16 = ssub.s32 512, 512
      %17 = vsyncadd [#allocation3], %s16
      %s18 = sshll.u32 [#allocation2], 4
      %s19 = int_to_ptr.vmem [resolvable:$true] %s18
      %24 = dma.hbm_to_vmem [thread:$0]  %s0, 512, %s19, [#allocation3], 128, 128, 8
    $region5: #{tpu_custom_call.1} parent=1 // pred_fallthru
      _
    // Predicated region
    $region6: #{tpu_custom_call.1} parent=1 // pred_check
      _
    $region7: #{tpu_custom_call.1} parent=1 // pred_check_branch
      %26 = sbr.rel (0) target = $region9
    $region8: #{tpu_custom_call.1} parent=1 // pred_region
      %s28 = ssub.s32 512, 512
      %29 = vsyncadd [#allocation6], %s28
      %s30 = sshll.u32 [#allocation5], 4
      %s31 = int_to_ptr.vmem [resolvable:$true] %s30
      %36 = dma.hbm_to_vmem [thread:$0]  %s1, 512, %s31, [#allocation6], 128, 128, 8
    $region9: #{tpu_custom_call.1} parent=1 // pred_fallthru
      _
    // Predicated region
    $region10: #{tpu_custom_call.1} parent=1 // pred_check
      _
    $region11: #{tpu_custom_call.1} parent=1 // pred_check_branch
      %38 = sbr.rel (0) target = $region13
    $region12: #{tpu_custom_call.1} parent=1 // pred_region
      %s40 = ssub.s32 512, 512
      %41 = vsyncadd [#allocation6], %s40
      %s42 = sshll.u32 [#allocation7], 4
      %s43 = int_to_ptr.vmem [resolvable:$true] %s42
      %48 = dma.hbm_to_vmem [thread:$0]  %s2, 512, %s43, [#allocation6], 128, 128, 8
    $region13: #{tpu_custom_call.1} parent=1 // pred_fallthru
      _
    // Predicated region
    $region14: #{tpu_custom_call.1} parent=1 // pred_check
      _
    $region15: #{tpu_custom_call.1} parent=1 // pred_check_branch
      %50 = sbr.rel (0) target = $region17
    $region16: #{tpu_custom_call.1} parent=1 // pred_region
      %s52 = ssub.s32 512, 512
      %53 = vsyncadd [#allocation9], %s52
      %s54 = sshll.u32 [#allocation8], 4
      %s55 = int_to_ptr.vmem [resolvable:$true] %s54
      %60 = dma.hbm_to_vmem [thread:$0]  %s3, 512, %s55, [#allocation9], 128, 128, 8
    $region17: #{tpu_custom_call.1} parent=1 // pred_fallthru
      _
    // Predicated region
    $region18: #{tpu_custom_call.1} parent=1 // pred_check
      _
    $region19: #{tpu_custom_call.1} parent=1 // pred_check_branch
      %62 = sbr.rel (0) target = $region21
    $region20: #{tpu_custom_call.1} parent=1 // pred_region
      %63 = dma.done [#allocation3], 512
    $region21: #{tpu_custom_call.1} parent=1 // pred_fallthru
      _
    // Predicated region
    $region22: #{tpu_custom_call.1} parent=1 // pred_check
      _
    $region23: #{tpu_custom_call.1} parent=1 // pred_check_branch
      %65 = sbr.rel (0) target = $region25
    $region24: #{tpu_custom_call.1} parent=1 // pred_region
      %66 = dma.done [#allocation6], 512
    $region25: #{tpu_custom_call.1} parent=1 // pred_fallthru
      _
    // Predicated region
    $region26: #{tpu_custom_call.1} parent=1 // pred_check
      _
    $region27: #{tpu_custom_call.1} parent=1 // pred_check_branch
      %68 = sbr.rel (0) target = $region29
    $region28: #{tpu_custom_call.1} parent=1 // pred_region
      %69 = dma.done [#allocation6], 512
    $region29: #{tpu_custom_call.1} parent=1 // pred_fallthru
      _
    // Predicated region
    $region30: #{tpu_custom_call.1} parent=1 // pred_check
      _
    $region31: #{tpu_custom_call.1} parent=1 // pred_check_branch
      %71 = sbr.rel (0) target = $region33
    $region32: #{tpu_custom_call.1} parent=1 // pred_region
      %72 = dma.done [#allocation9], 512
    $region33: #{tpu_custom_call.1} parent=1 // pred_fallthru
      _
    %v73 = vld [vmem:[#allocation2] sm:$0xff]
    %v74 = vld [vmem:[#allocation2 + $0x8] sm:$0xff]
    %v75 = vld [vmem:[#allocation2 + $0x10] sm:$0xff]
    %v76 = vld [vmem:[#allocation2 + $0x18] sm:$0xff]
    %v77 = vmul.f32 %v73, %v73
    %v78 = vmul.f32 %v74, %v74
    %v79 = vmul.f32 %v75, %v75
    %v80 = vmul.f32 %v76, %v76
    %81 = vadd.xlane.f32.xlu0 %v77
    %v82 = vpop.xlane.xlu0 %81
    %83 = vadd.xlane.f32.xlu0 %v78
    %v84 = vpop.xlane.xlu0 %83
    %85 = vadd.xlane.f32.xlu0 %v79
    %v86 = vpop.xlane.xlu0 %85
    %87 = vadd.xlane.f32.xlu0 %v80
    %v88 = vpop.xlane.xlu0 %87
    %v89 = vmax.f32 %v82, 1e-24
    %v90 = vmax.f32 %v84, 1e-24
    %v91 = vmax.f32 %v86, 1e-24
    %v92 = vmax.f32 %v88, 1e-24
    %v93 = vrsqrt.pop %v89
    %v94 = vrsqrt.pop %v90
    %v95 = vrsqrt.pop %v91
    %v96 = vrsqrt.pop %v92
    %v97 = vmul.f32 %v73, %v93
    %v98 = vmul.f32 %v74, %v94
    %v99 = vmul.f32 %v75, %v95
    %v100 = vmul.f32 %v76, %v96
    %v101 = vld [vmem:[#allocation5] sm:$0xff]
    %v102 = vld [vmem:[#allocation5 + $0x8] sm:$0xff]
    %v103 = vld [vmem:[#allocation5 + $0x10] sm:$0xff]
    %v104 = vld [vmem:[#allocation5 + $0x18] sm:$0xff]
    %v105 = vmul.f32 %v101, %v101
    %v106 = vmul.f32 %v102, %v102
    %v107 = vmul.f32 %v103, %v103
    %v108 = vmul.f32 %v104, %v104
    %109 = vadd.xlane.f32.xlu0 %v105
    %v110 = vpop.xlane.xlu0 %109
    %111 = vadd.xlane.f32.xlu0 %v106
    %v112 = vpop.xlane.xlu0 %111
    %113 = vadd.xlane.f32.xlu0 %v107
    %v114 = vpop.xlane.xlu0 %113
    %115 = vadd.xlane.f32.xlu0 %v108
    %v116 = vpop.xlane.xlu0 %115
    %v117 = vmax.f32 %v110, 1e-24
    %v118 = vmax.f32 %v112, 1e-24
    %v119 = vmax.f32 %v114, 1e-24
    %v120 = vmax.f32 %v116, 1e-24
    %v121 = vrsqrt.pop %v117
    %v122 = vrsqrt.pop %v118
    %v123 = vrsqrt.pop %v119
    %v124 = vrsqrt.pop %v120
    %v125 = vmul.f32 %v101, %v121
    %v126 = vmul.f32 %v102, %v122
    %v127 = vmul.f32 %v103, %v123
    %v128 = vmul.f32 %v104, %v124
    %v129 = vld [vmem:[#allocation7] sm:$0xff]
    %v130 = vld [vmem:[#allocation7 + $0x8] sm:$0xff]
    %v131 = vld [vmem:[#allocation7 + $0x10] sm:$0xff]
    %v132 = vld [vmem:[#allocation7 + $0x18] sm:$0xff]
    %v133 = vmul.f32 %v129, %v129
    %v134 = vmul.f32 %v130, %v130
    %v135 = vmul.f32 %v131, %v131
    %v136 = vmul.f32 %v132, %v132
    %137 = vadd.xlane.f32.xlu0 %v133
    %v138 = vpop.xlane.xlu0 %137
    %139 = vadd.xlane.f32.xlu0 %v134
    %v140 = vpop.xlane.xlu0 %139
    %141 = vadd.xlane.f32.xlu0 %v135
    %v142 = vpop.xlane.xlu0 %141
    %143 = vadd.xlane.f32.xlu0 %v136
    %v144 = vpop.xlane.xlu0 %143
    %v145 = vmax.f32 %v138, 1e-24
    %v146 = vmax.f32 %v140, 1e-24
    %v147 = vmax.f32 %v142, 1e-24
    %v148 = vmax.f32 %v144, 1e-24
    %v149 = vrsqrt.pop %v145
    %v150 = vrsqrt.pop %v146
    %v151 = vrsqrt.pop %v147
    %v152 = vrsqrt.pop %v148
    %v153 = vmul.f32 %v129, %v149
    %v154 = vmul.f32 %v130, %v150
    %v155 = vmul.f32 %v131, %v151
    %v156 = vmul.f32 %v132, %v152
    %v157 = vld [vmem:[#allocation8] sm:$0xff]
    %v158 = vld [vmem:[#allocation8 + $0x8] sm:$0xff]
    %v159 = vld [vmem:[#allocation8 + $0x10] sm:$0xff]
    %v160 = vld [vmem:[#allocation8 + $0x18] sm:$0xff]
    %v161 = vmul.f32 %v157, %v157
    %v162 = vmul.f32 %v158, %v158
    %v163 = vmul.f32 %v159, %v159
    %v164 = vmul.f32 %v160, %v160
    %165 = vadd.xlane.f32.xlu0 %v161
    %v166 = vpop.xlane.xlu0 %165
    %167 = vadd.xlane.f32.xlu0 %v162
    %v168 = vpop.xlane.xlu0 %167
    %169 = vadd.xlane.f32.xlu0 %v163
    %v170 = vpop.xlane.xlu0 %169
    %171 = vadd.xlane.f32.xlu0 %v164
    %v172 = vpop.xlane.xlu0 %171
    %v173 = vmax.f32 %v166, 1e-24
    %v174 = vmax.f32 %v168, 1e-24
    %v175 = vmax.f32 %v170, 1e-24
    %v176 = vmax.f32 %v172, 1e-24
    %v177 = vrsqrt.pop %v173
    %v178 = vrsqrt.pop %v174
    %v179 = vrsqrt.pop %v175
    %v180 = vrsqrt.pop %v176
    %v181 = vmul.f32 %v157, %v177
    %v182 = vmul.f32 %v158, %v178
    %v183 = vmul.f32 %v159, %v179
    %v184 = vmul.f32 %v160, %v180
    %v185 = vmul.f32 %v97, %v125
    %v186 = vmul.f32 %v98, %v126
    %v187 = vmul.f32 %v99, %v127
    %v188 = vmul.f32 %v100, %v128
    %v189 = vmul.f32 %v153, %v181
    %v190 = vmul.f32 %v154, %v182
    %v191 = vmul.f32 %v155, %v183
    %v192 = vmul.f32 %v156, %v184
    %v193 = vadd.f32 %v185, %v189
    %v194 = vadd.f32 %v186, %v190
    %v195 = vadd.f32 %v187, %v191
    %v196 = vadd.f32 %v188, %v192
    %v197 = vadd.f32 %v193, %v194
    %v198 = vadd.f32 %v197, %v195
    %v199 = vadd.f32 %v198, %v196
    %200 = vst [vmem:[#allocation10] sm:$0xff] %v199
    // Predicated region
    $region34: #{tpu_custom_call.1} parent=1 // pred_check
      _
    $region35: #{tpu_custom_call.1} parent=1 // pred_check_branch
      %202 = sbr.rel (0) target = $region37
    $region36: #{tpu_custom_call.1} parent=1 // pred_region
      %s204 = ssub.s32 128, 128
      %205 = vsyncadd [#allocation4], %s204
      %s207 = sshll.u32 [#allocation10], 4
      %s208 = int_to_ptr.vmem [resolvable:$true] %s207
      %210 = dma.vmem_to_hbm [thread:$0]  %s208, 128, %s4, [#allocation4]
    $region37: #{tpu_custom_call.1} parent=1 // pred_fallthru
      _
    // Predicated region
    $region38: #{tpu_custom_call.1} parent=1 // pred_check
      _
    $region39: #{tpu_custom_call.1} parent=1 // pred_check_branch
      %212 = sbr.rel (0) target = $region41
    $region40: #{tpu_custom_call.1} parent=1 // pred_region
      %213 = dma.done [#allocation4], 128
    $region41: #{tpu_custom_call.1} parent=1 // pred_fallthru
      _
    %214 = vsyncpa [#allocation3], 1
    %215 = vsyncpa [#allocation6], 1
    %216 = vsyncpa [#allocation9], 1
    %217 = vsyncpa [#allocation4], 1

</llo_original>
